<compile_context>
chip_gen: v6e
topology: v6e:2x2x1
jax: 0.10.0
libtpu: 0.0.40
codegen_flags: <defaults>
</compile_context>

<pallas_src>
import functools
import math

import jax
import jax.numpy as jnp
from jax.experimental import pallas as pl
from jax.experimental.pallas import tpu as pltpu


def _pick_chunk(rows_tile):
    # Compute-chunk height: keeps the three f32 accumulator planes (m, s,
    # x_lbl) within the 64-vreg register file even when the DMA tile is
    # 256+ rows tall.
    for c in (32, 16, 8):
        if rows_tile % c == 0:
            return c
    return rows_tile  # small / odd tiles: single chunk


def _ce_kernel(logits_ref, labels_ref, loss_ref, sum_ref, cnt_ref, *,
               num_classes, ignore_lb, thresh_val, hw_valid, rows_tile, chunk,
               mask_tail):
    # logits_ref: (1, C, rows_tile, 128)  input dtype (f32 / bf16), upcast here
    # labels_ref: (1, rows_tile, 128)     int32
    # loss_ref  : (1, rows_tile, 128)     f32 per-pixel CE (0 for ignored/padded)
    # sum_ref   : (1, 1, 1, 128)          f32 per-lane partial sum of loss>thresh
    # cnt_ref   : (1, 1, 1, 128)          f32 per-lane partial count of loss>thresh
    tile_row0 = pl.program_id(1) * rows_tile

    def do_rows(r0, nr):
        lbl = labels_ref[0, pl.ds(r0, nr), :]

        # Running max over classes: unrolled full-width VPU maxes (classes on
        # a leading axis, pixels on the 128 lanes -> no cross-lane XLU work).
        m = logits_ref[0, 0, pl.ds(r0, nr), :].astype(jnp.float32)
        for c in range(1, num_classes):
            m = jnp.maximum(
                m, logits_ref[0, c, pl.ds(r0, nr), :].astype(jnp.float32))

        # Sum-of-exp and gather-at-label, unrolled over the small class dim.
        s = jnp.zeros_like(m)
        x_lbl = jnp.zeros_like(m)
        for c in range(num_classes):
            xc = logits_ref[0, c, pl.ds(r0, nr), :].astype(jnp.float32)
            s = s + jnp.exp(xc - m)
            x_lbl = jnp.where(lbl == c, xc, x_lbl)
        # NOTE: labels outside [0, C) that are not ignore_lb give
        # loss = logsumexp(x) (x_lbl stays 0) instead of raising like PyTorch.
        loss = (m + jnp.log(s)) - x_lbl

        # ignore_index semantics, plus masking of pixels past H*W when the
        # ragged last grid tile / 128-pad region overruns the real image.
        valid = lbl != ignore_lb
        in_range = None
        if mask_tail:
            rows = jax.lax.broadcasted_iota(jnp.int32, (nr, 128), 0)
            cols = jax.lax.broadcasted_iota(jnp.int32, (nr, 128), 1)
            pix = (rows + (tile_row0 + r0)) * 128 + cols
            in_range = pix < hw_valid
            valid = valid & in_range
        loss = jnp.where(valid, loss, 0.0)
        loss_ref[0, pl.ds(r0, nr), :] = loss

        # Fused OHEM partials (free VPU filler in this mem-bound kernel):
        # ignored pixels carry loss 0 exactly like PyTorch's reduction='none'
        # vector, so the strict `> thresh` test below matches it for any sign
        # of thresh_val; only non-existent (padded / overrun) pixels are
        # excluded.
        gt = loss > thresh_val
        if mask_tail:
            gt = gt & in_range
        psum = jnp.sum(jnp.where(gt, loss, 0.0), axis=0, keepdims=True)
        pcnt = jnp.sum(gt.astype(jnp.float32), axis=0, keepdims=True)
        return psum, pcnt

    n_full = rows_tile // chunk
    rem = rows_tile - n_full * chunk

    def body(i, carry):
        acc_s, acc_c = carry
        r0 = pl.multiple_of(i * chunk, chunk)
        ps, pc = do_rows(r0, chunk)
        return acc_s + ps, acc_c + pc

    acc0 = (jnp.zeros((1, 128), jnp.float32), jnp.zeros((1, 128), jnp.float32))
    acc_s, acc_c = jax.lax.fori_loop(0, n_full, body, acc0,
                                     unroll=(n_full <= 8))
    if rem:
        ps, pc = do_rows(n_full * chunk, rem)
        acc_s = acc_s + ps
        acc_c = acc_c + pc

    sum_ref[0, 0] = acc_s
    cnt_ref[0, 0] = acc_c


def _per_pixel_ce(logits_ncr, labels_nr, *, ignore_lb, thresh_val, hw_valid,
                  rows_tile, chunk):
    # logits_ncr: (N, C, R, 128); labels_nr: (N, R, 128) int32
    N, C, R, L = logits_ncr.shape
    assert L == 128
    T = pl.cdiv(R, rows_tile)           # ragged last tile allowed (edge block)
    mask_tail = (T * rows_tile * 128) != hw_valid

    kernel = functools.partial(
        _ce_kernel, num_classes=C, ignore_lb=ignore_lb, thresh_val=thresh_val,
        hw_valid=hw_valid, rows_tile=rows_tile, chunk=chunk,
        mask_tail=mask_tail)

    bytes_per_pix = C * logits_ncr.dtype.itemsize + 4 + 4  # logits + label + loss
    cost = pl.CostEstimate(
        flops=int(6 * N * hw_valid * C),
        transcendentals=int(N * hw_valid * (C + 1)),
        bytes_accessed=int(N * hw_valid * bytes_per_pix),
    )

    return pl.pallas_call(
        kernel,
        out_shape=(
            jax.ShapeDtypeStruct((N, R, 128), jnp.float32),      # per-pixel loss
            jax.ShapeDtypeStruct((N, T, 1, 128), jnp.float32),   # sum(loss>th)
            jax.ShapeDtypeStruct((N, T, 1, 128), jnp.float32),   # cnt(loss>th)
        ),
        grid_spec=pltpu.PrefetchScalarGridSpec(
            num_scalar_prefetch=0,
            grid=(N, T),
            in_specs=[
                pl.BlockSpec((1, C, rows_tile, 128), lambda n, t: (n, 0, t, 0)),
                pl.BlockSpec((1, rows_tile, 128), lambda n, t: (n, t, 0)),
            ],
            out_specs=(
                pl.BlockSpec((1, rows_tile, 128), lambda n, t: (n, t, 0)),
                pl.BlockSpec((1, 1, 1, 128), lambda n, t: (n, t, 0, 0)),
                pl.BlockSpec((1, 1, 1, 128), lambda n, t: (n, t, 0, 0)),
            ),
        ),
        compiler_params=pltpu.CompilerParams(
            dimension_semantics=("parallel", "parallel"),
            # 32 MiB is the v7x-safe scoped budget; the default 256-row f32
            # tile double-buffers to ~5 MiB even at C~19, well inside it.
            vmem_limit_bytes=32 * 1024 * 1024,
        ),
        cost_estimate=cost,
    )(logits_ncr, labels_nr)


def ohem_ce_loss(logits, labels, *, thresh, n_min, ignore_lb=255,
                 max_rows_per_tile=256):
    """OHEM cross-entropy loss (same forward semantics as the PyTorch module).

    logits: (N, C, H, W) float32 / bfloat16 (feed bf16 to halve the HBM stream)
    labels: (N, H, W)    int
    """
    N, C, H, W = logits.shape
    assert labels.shape == (N, H, W)
    assert max_rows_per_tile >= 8 and max_rows_per_tile % 8 == 0
    HW = H * W
    P = N * HW

    # Pixels sit on the 128-lane axis; `rows_tile` sublane rows per grid step.
    R = pl.cdiv(HW, 128)
    rows_tile = R if R <= max_rows_per_tile else max_rows_per_tile
    chunk = _pick_chunk(rows_tile)
    hw_pad = R * 128

    logits_f = logits.reshape(N, C, HW)                  # free row-major reshape
    labels_f = labels.reshape(N, HW).astype(jnp.int32)
    if hw_pad != HW:
        # Only when H*W is not a multiple of 128 (rare for segmentation
        # shapes); everything else is handled by in-kernel tail masking.
        logits_f = jnp.pad(logits_f, ((0, 0), (0, 0), (0, hw_pad - HW)))
        labels_f = jnp.pad(labels_f, ((0, 0), (0, hw_pad - HW)),
                           constant_values=ignore_lb)
    logits_ncr = logits_f.reshape(N, C, R, 128)
    labels_nr = labels_f.reshape(N, R, 128)

    thresh_val = float(-math.log(float(thresh)))

    loss_nr, sum_part, cnt_part = _per_pixel_ce(
        logits_ncr, labels_nr, ignore_lb=ignore_lb, thresh_val=thresh_val,
        hw_valid=HW, rows_tile=rows_tile, chunk=chunk)

    # Fused OHEM reductions (tiny glue sums over N*T*128 partials).
    sum_gt = jnp.sum(sum_part)
    cnt_gt = jnp.sum(cnt_part.astype(jnp.int32))

    # loss_sorted[n_min] > thresh  <=>  count(loss > thresh) >= n_min + 1.
    # NOTE: if n_min >= P PyTorch would raise an index error; here cond is
    # simply False and we average the top min(n_min, P) losses.
    cond = cnt_gt > n_min
    mean_gt = sum_gt / jnp.maximum(cnt_gt, 1).astype(jnp.float32)

    def _mean_top(_):
        # Fallback branch only: mean of the top n_min per-pixel losses.
        per_pixel = loss_nr.reshape(N, hw_pad)[:, :HW].reshape(-1)
        k = min(int(n_min), P)
        return jnp.mean(jax.lax.top_k(per_pixel, k)[0])

    return jax.lax.cond(cond, lambda _: mean_gt, _mean_top, 0)


def _ref_ohem(logits, labels, thresh, n_min, ignore_lb):
    """Plain-JAX reference of the PyTorch forward (for a correctness check)."""
    N, C, H, W = logits.shape
    x = jnp.transpose(logits, (0, 2, 3, 1)).reshape(-1, C).astype(jnp.float32)
    y = labels.reshape(-1)
    logp = jax.nn.log_softmax(x, axis=-1)
    ce = -jnp.take_along_axis(logp, jnp.clip(y, 0, C - 1)[:, None], axis=-1)[:, 0]
    ce = jnp.where(y == ignore_lb, 0.0, ce)
    thresh_val = -jnp.log(jnp.asarray(thresh, jnp.float32))
    srt = jnp.sort(ce)[::-1]
    cond = srt[n_min] > thresh_val
    gt = srt > thresh_val
    mean_gt = jnp.sum(jnp.where(gt, srt, 0.0)) / jnp.maximum(jnp.sum(gt), 1)
    mean_top = jnp.mean(srt[:n_min])
    return jnp.where(cond, mean_gt, mean_top)


if __name__ == "__main__":
    key = jax.random.PRNGKey(0)
    k1, k2, k3, k4 = jax.random.split(key, 4)

    ignore_lb = 255
    thresh = 0.7

    # Case 1: aligned H*W (multiple of 128), default tiling.
    N, C, H, W = 2, 4, 16, 16
    logits = jax.random.normal(k1, (N, C, H, W), dtype=jnp.float32)
    labels = jax.random.randint(k2, (N, H, W), 0, C, dtype=jnp.int32)
    labels = labels.at[0, 0, :4].set(ignore_lb)
    n_min = (N * H * W) // 16
    out = ohem_ce_loss(logits, labels, thresh=thresh, n_min=n_min,
                       ignore_lb=ignore_lb)
    ref = _ref_ohem(logits, labels, thresh, n_min, ignore_lb)
    jax.block_until_ready((out, ref))
    assert out.shape == () and bool(jnp.isfinite(out))
    assert bool(jnp.abs(out - ref) < 2e-4), (out, ref)

    # Case 2: misaligned H*W (exercises the 128-pad fallback + tail masking).
    N2, C2, H2, W2 = 2, 5, 15, 9
    logits2 = jax.random.normal(k3, (N2, C2, H2, W2), dtype=jnp.float32)
    labels2 = jax.random.randint(k4, (N2, H2, W2), 0, C2, dtype=jnp.int32)
    labels2 = labels2.at[1, :3, :].set(ignore_lb)
    n_min2 = (N2 * H2 * W2) // 16
    out2 = ohem_ce_loss(logits2, labels2, thresh=thresh, n_min=n_min2,
                        ignore_lb=ignore_lb)
    ref2 = _ref_ohem(logits2, labels2, thresh, n_min2, ignore_lb)
    jax.block_until_ready((out2, ref2))
    assert bool(jnp.abs(out2 - ref2) < 2e-4), (out2, ref2)

    # Case 3: multi-tile grid with a ragged last tile (rows_tile < R), plus a
    # bf16-logits run (kernel upcasts in-register, halving the HBM stream).
    N3, C3, H3, W3 = 1, 6, 48, 48
    logits3 = jax.random.normal(k1, (N3, C3, H3, W3), dtype=jnp.float32)
    labels3 = jax.random.randint(k2, (N3, H3, W3), 0, C3, dtype=jnp.int32)
    n_min3 = (N3 * H3 * W3) // 16
    out3 = ohem_ce_loss(logits3, labels3, thresh=thresh, n_min=n_min3,
                        ignore_lb=ignore_lb, max_rows_per_tile=8)
    ref3 = _ref_ohem(logits3, labels3, thresh, n_min3, ignore_lb)
    jax.block_until_ready((out3, ref3))
    assert bool(jnp.abs(out3 - ref3) < 2e-4), (out3, ref3)

    out3b = ohem_ce_loss(logits3.astype(jnp.bfloat16), labels3, thresh=thresh,
                         n_min=n_min3, ignore_lb=ignore_lb)
    ref3b = _ref_ohem(logits3.astype(jnp.bfloat16), labels3, thresh, n_min3,
                      ignore_lb)
    jax.block_until_ready((out3b, ref3b))
    assert bool(jnp.abs(out3b - ref3b) < 2e-3), (out3b, ref3b)

    print("KERNEL_OK")
</pallas_src>

<mosaic_0001>
module attributes {stable_mosaic.version = 11 : i64} {
  func.func @_ce_kernel(%arg0: i32, %arg1: i32, %arg2: memref<1x4x2x128xf32, #tpu.memory_space<vmem>>, %arg3: memref<1x2x128xi32, #tpu.memory_space<vmem>>, %arg4: memref<1x2x128xf32, #tpu.memory_space<vmem>>, %arg5: memref<1x1x1x128xf32, #tpu.memory_space<vmem>>, %arg6: memref<1x1x1x128xf32, #tpu.memory_space<vmem>>) attributes {dimension_semantics = [#tpu.dimension_semantics<parallel>, #tpu.dimension_semantics<parallel>], iteration_bounds = array<i64: 2, 1>, scalar_prefetch = 0 : i64, scratch_operands = 0 : i64, tpu.core_type = #tpu.core_type<tc>, window_params = [{transform_indices = @transform_0, window_bounds = array<i64: 1, 4, 2, 128>}, {transform_indices = @transform_1, window_bounds = array<i64: 1, 2, 128>}, {transform_indices = @transform_2, window_bounds = array<i64: 1, 2, 128>}, {transform_indices = @transform_3, window_bounds = array<i64: 1, 1, 1, 128>}, {transform_indices = @transform_4, window_bounds = array<i64: 1, 1, 1, 128>}]} {
    %cst = arith.constant 0.000000e+00 : f32
    %0 = vector.broadcast %cst : f32 to vector<1x128xf32>
    %cst_0 = arith.constant 0.000000e+00 : f32
    %1 = vector.broadcast %cst_0 : f32 to vector<1x128xf32>
    %c0_i32 = arith.constant 0 : i32
    %c2_i32 = arith.constant 2 : i32
    %2 = arith.muli %c0_i32, %c2_i32 : i32
    %3 = tpu.assume_multiple %2, 2 : i32
    %c0 = arith.constant 0 : index
    %4 = arith.index_cast %3 : i32 to index
    %c0_1 = arith.constant 0 : index
    %5 = vector.load %arg3[%c0, %4, %c0_1] : memref<1x2x128xi32, #tpu.memory_space<vmem>>, vector<1x2x128xi32>
    %6 = vector.shape_cast %5 : vector<1x2x128xi32> to vector<2x128xi32>
    %c0_2 = arith.constant 0 : index
    %c0_3 = arith.constant 0 : index
    %7 = arith.index_cast %3 : i32 to index
    %c0_4 = arith.constant 0 : index
    %8 = vector.load %arg2[%c0_2, %c0_3, %7, %c0_4] : memref<1x4x2x128xf32, #tpu.memory_space<vmem>>, vector<1x1x2x128xf32>
    %9 = vector.shape_cast %8 : vector<1x1x2x128xf32> to vector<2x128xf32>
    %c0_5 = arith.constant 0 : index
    %c1 = arith.constant 1 : index
    %10 = arith.index_cast %3 : i32 to index
    %c0_6 = arith.constant 0 : index
    %11 = vector.load %arg2[%c0_5, %c1, %10, %c0_6] : memref<1x4x2x128xf32, #tpu.memory_space<vmem>>, vector<1x1x2x128xf32>
    %12 = vector.shape_cast %11 : vector<1x1x2x128xf32> to vector<2x128xf32>
    %13 = arith.maximumf %9, %12 : vector<2x128xf32>
    %c0_7 = arith.constant 0 : index
    %c2 = arith.constant 2 : index
    %14 = arith.index_cast %3 : i32 to index
    %c0_8 = arith.constant 0 : index
    %15 = vector.load %arg2[%c0_7, %c2, %14, %c0_8] : memref<1x4x2x128xf32, #tpu.memory_space<vmem>>, vector<1x1x2x128xf32>
    %16 = vector.shape_cast %15 : vector<1x1x2x128xf32> to vector<2x128xf32>
    %17 = arith.maximumf %13, %16 : vector<2x128xf32>
    %c0_9 = arith.constant 0 : index
    %c3 = arith.constant 3 : index
    %18 = arith.index_cast %3 : i32 to index
    %c0_10 = arith.constant 0 : index
    %19 = vector.load %arg2[%c0_9, %c3, %18, %c0_10] : memref<1x4x2x128xf32, #tpu.memory_space<vmem>>, vector<1x1x2x128xf32>
    %20 = vector.shape_cast %19 : vector<1x1x2x128xf32> to vector<2x128xf32>
    %21 = arith.maximumf %17, %20 : vector<2x128xf32>
    %cst_11 = arith.constant 0.000000e+00 : f32
    %22 = vector.broadcast %cst_11 : f32 to vector<2x128xf32>
    %cst_12 = arith.constant 0.000000e+00 : f32
    %23 = vector.broadcast %cst_12 : f32 to vector<2x128xf32>
    %c0_13 = arith.constant 0 : index
    %c0_14 = arith.constant 0 : index
    %24 = arith.index_cast %3 : i32 to index
    %c0_15 = arith.constant 0 : index
    %25 = vector.load %arg2[%c0_13, %c0_14, %24, %c0_15] : memref<1x4x2x128xf32, #tpu.memory_space<vmem>>, vector<1x1x2x128xf32>
    %26 = vector.shape_cast %25 : vector<1x1x2x128xf32> to vector<2x128xf32>
    %27 = arith.subf %26, %21 : vector<2x128xf32>
    %28 = math.exp %27 : vector<2x128xf32>
    %29 = arith.addf %22, %28 : vector<2x128xf32>
    %c0_i32_16 = arith.constant 0 : i32
    %30 = vector.broadcast %c0_i32_16 : i32 to vector<2x128xi32>
    %31 = arith.cmpi eq, %6, %30 : vector<2x128xi32>
    %32 = arith.select %31, %26, %23 : vector<2x128xi1>, vector<2x128xf32>
    %c0_17 = arith.constant 0 : index
    %c1_18 = arith.constant 1 : index
    %33 = arith.index_cast %3 : i32 to index
    %c0_19 = arith.constant 0 : index
    %34 = vector.load %arg2[%c0_17, %c1_18, %33, %c0_19] : memref<1x4x2x128xf32, #tpu.memory_space<vmem>>, vector<1x1x2x128xf32>
    %35 = vector.shape_cast %34 : vector<1x1x2x128xf32> to vector<2x128xf32>
    %36 = arith.subf %35, %21 : vector<2x128xf32>
    %37 = math.exp %36 : vector<2x128xf32>
    %38 = arith.addf %29, %37 : vector<2x128xf32>
    %c1_i32 = arith.constant 1 : i32
    %39 = vector.broadcast %c1_i32 : i32 to vector<2x128xi32>
    %40 = arith.cmpi eq, %6, %39 : vector<2x128xi32>
    %41 = arith.select %40, %35, %32 : vector<2x128xi1>, vector<2x128xf32>
    %c0_20 = arith.constant 0 : index
    %c2_21 = arith.constant 2 : index
    %42 = arith.index_cast %3 : i32 to index
    %c0_22 = arith.constant 0 : index
    %43 = vector.load %arg2[%c0_20, %c2_21, %42, %c0_22] : memref<1x4x2x128xf32, #tpu.memory_space<vmem>>, vector<1x1x2x128xf32>
    %44 = vector.shape_cast %43 : vector<1x1x2x128xf32> to vector<2x128xf32>
    %45 = arith.subf %44, %21 : vector<2x128xf32>
    %46 = math.exp %45 : vector<2x128xf32>
    %47 = arith.addf %38, %46 : vector<2x128xf32>
    %c2_i32_23 = arith.constant 2 : i32
    %48 = vector.broadcast %c2_i32_23 : i32 to vector<2x128xi32>
    %49 = arith.cmpi eq, %6, %48 : vector<2x128xi32>
    %50 = arith.select %49, %44, %41 : vector<2x128xi1>, vector<2x128xf32>
    %c0_24 = arith.constant 0 : index
    %c3_25 = arith.constant 3 : index
    %51 = arith.index_cast %3 : i32 to index
    %c0_26 = arith.constant 0 : index
    %52 = vector.load %arg2[%c0_24, %c3_25, %51, %c0_26] : memref<1x4x2x128xf32, #tpu.memory_space<vmem>>, vector<1x1x2x128xf32>
    %53 = vector.shape_cast %52 : vector<1x1x2x128xf32> to vector<2x128xf32>
    %54 = arith.subf %53, %21 : vector<2x128xf32>
    %55 = math.exp %54 : vector<2x128xf32>
    %56 = arith.addf %47, %55 : vector<2x128xf32>
    %c3_i32 = arith.constant 3 : i32
    %57 = vector.broadcast %c3_i32 : i32 to vector<2x128xi32>
    %58 = arith.cmpi eq, %6, %57 : vector<2x128xi32>
    %59 = arith.select %58, %53, %50 : vector<2x128xi1>, vector<2x128xf32>
    %60 = math.log %56 : vector<2x128xf32>
    %61 = arith.addf %21, %60 : vector<2x128xf32>
    %62 = arith.subf %61, %59 : vector<2x128xf32>
    %c255_i32 = arith.constant 255 : i32
    %63 = vector.broadcast %c255_i32 : i32 to vector<2x128xi32>
    %64 = arith.cmpi ne, %6, %63 : vector<2x128xi32>
    %cst_27 = arith.constant 0.000000e+00 : f32
    %65 = vector.broadcast %cst_27 : f32 to vector<2x128xf32>
    %66 = arith.select %64, %62, %65 : vector<2x128xi1>, vector<2x128xf32>
    %c0_28 = arith.constant 0 : index
    %67 = arith.index_cast %3 : i32 to index
    %c0_29 = arith.constant 0 : index
    %68 = vector.load %arg4[%c0_28, %67, %c0_29] : memref<1x2x128xf32, #tpu.memory_space<vmem>>, vector<1x2x128xf32>
    %69 = vector.shape_cast %68 : vector<1x2x128xf32> to vector<2x128xf32>
    %70 = vector.shape_cast %66 : vector<2x128xf32> to vector<1x2x128xf32>
    tpu.vector_store %arg4[%c0_28, %67, %c0_29], %70 {strides = array<i32>} : memref<1x2x128xf32, #tpu.memory_space<vmem>>, vector<1x2x128xf32>,
    %cst_30 = arith.constant 0.356674939 : f32
    %71 = vector.broadcast %cst_30 : f32 to vector<2x128xf32>
    %72 = arith.cmpf ogt, %66, %71 : vector<2x128xf32>
    %cst_31 = arith.constant 0.000000e+00 : f32
    %73 = vector.broadcast %cst_31 : f32 to vector<2x128xf32>
    %74 = arith.select %72, %66, %73 : vector<2x128xi1>, vector<2x128xf32>
    %cst_32 = arith.constant dense<0.000000e+00> : vector<128xf32>
    %75 = vector.multi_reduction <add>, %74, %cst_32 [0] : vector<2x128xf32> to vector<128xf32>
    %76 = vector.shape_cast %75 : vector<128xf32> to vector<1x128xf32>
    %77 = arith.extui %72 : vector<2x128xi1> to vector<2x128xi32>
    %78 = arith.sitofp %77 : vector<2x128xi32> to vector<2x128xf32>
    %cst_33 = arith.constant dense<0.000000e+00> : vector<128xf32>
    %79 = vector.multi_reduction <add>, %78, %cst_33 [0] : vector<2x128xf32> to vector<128xf32>
    %80 = vector.shape_cast %79 : vector<128xf32> to vector<1x128xf32>
    %81 = arith.addf %0, %76 : vector<1x128xf32>
    %82 = arith.addf %1, %80 : vector<1x128xf32>
    %c1_i32_34 = arith.constant 1 : i32
    %c0_35 = arith.constant 0 : index
    %c0_36 = arith.constant 0 : index
    %c0_37 = arith.constant 0 : index
    %c0_38 = arith.constant 0 : index
    %83 = vector.load %arg5[%c0_35, %c0_36, %c0_37, %c0_38] : memref<1x1x1x128xf32, #tpu.memory_space<vmem>>, vector<1x1x1x128xf32>
    %84 = vector.shape_cast %83 : vector<1x1x1x128xf32> to vector<1x128xf32>
    %85 = vector.shape_cast %81 : vector<1x128xf32> to vector<1x1x1x128xf32>
    tpu.vector_store %arg5[%c0_35, %c0_36, %c0_37, %c0_38], %85 {strides = array<i32>} : memref<1x1x1x128xf32, #tpu.memory_space<vmem>>, vector<1x1x1x128xf32>,
    %c0_39 = arith.constant 0 : index
    %c0_40 = arith.constant 0 : index
    %c0_41 = arith.constant 0 : index
    %c0_42 = arith.constant 0 : index
    %86 = vector.load %arg6[%c0_39, %c0_40, %c0_41, %c0_42] : memref<1x1x1x128xf32, #tpu.memory_space<vmem>>, vector<1x1x1x128xf32>
    %87 = vector.shape_cast %86 : vector<1x1x1x128xf32> to vector<1x128xf32>
    %88 = vector.shape_cast %82 : vector<1x128xf32> to vector<1x1x1x128xf32>
    tpu.vector_store %arg6[%c0_39, %c0_40, %c0_41, %c0_42], %88 {strides = array<i32>} : memref<1x1x1x128xf32, #tpu.memory_space<vmem>>, vector<1x1x1x128xf32>,
    return
  }
  func.func @transform_0(%arg0: i32, %arg1: i32) -> (i32, i32, i32, i32) {
    %c0_i32 = arith.constant 0 : i32
    %c0_i32_0 = arith.constant 0 : i32
    %c0_i32_1 = arith.constant 0 : i32
    return %arg0, %c0_i32, %arg1, %c0_i32_0 : i32, i32, i32, i32
  }
  func.func @transform_1(%arg0: i32, %arg1: i32) -> (i32, i32, i32) {
    %c0_i32 = arith.constant 0 : i32
    %c0_i32_0 = arith.constant 0 : i32
    return %arg0, %arg1, %c0_i32 : i32, i32, i32
  }
  func.func @transform_2(%arg0: i32, %arg1: i32) -> (i32, i32, i32) {
    %c0_i32 = arith.constant 0 : i32
    %c0_i32_0 = arith.constant 0 : i32
    return %arg0, %arg1, %c0_i32 : i32, i32, i32
  }
  func.func @transform_3(%arg0: i32, %arg1: i32) -> (i32, i32, i32, i32) {
    %c0_i32 = arith.constant 0 : i32
    %c0_i32_0 = arith.constant 0 : i32
    %c0_i32_1 = arith.constant 0 : i32
    return %arg0, %arg1, %c0_i32, %c0_i32_0 : i32, i32, i32, i32
  }
  func.func @transform_4(%arg0: i32, %arg1: i32) -> (i32, i32, i32, i32) {
    %c0_i32 = arith.constant 0 : i32
    %c0_i32_0 = arith.constant 0 : i32
    %c0_i32_1 = arith.constant 0 : i32
    return %arg0, %arg1, %c0_i32, %c0_i32_0 : i32, i32, i32, i32
  }
}

</mosaic_0001>

<llo_original>
// kernel: tpu_custom_call.1
$region0: #{tpu_custom_call.1}
  #allocation0 [shape = 'u32[]', space=smem, size = 0x4, offset = 0x4, fixed_abs, tag = 'smem constant byte address 0x4 - core index']
  #allocation1 [shape = 'u32[144,128]{1,0:T(1,128)}', space=vmem, size = 0x12000, scoped, tag = 'internal scratch']
  %s0 = inlined_call_operand.hbm [shape: f32[2,4,2,128], index: 0, kind: input, shape index: {}]
  %s1 = inlined_call_operand.hbm [shape: s32[2,2,128], index: 1, kind: input, shape index: {}]
  %s2 = inlined_call_operand.hbm [shape: f32[2,2,128], index: 2, kind: output, shape index: {0}]
  %s3 = inlined_call_operand.hbm [shape: f32[2,1,1,128], index: 3, kind: output, shape index: {1}]
  %s4 = inlined_call_operand.hbm [shape: f32[2,1,1,128], index: 4, kind: output, shape index: {2}]
  %5 = xla_tuple %s2, %s3, %s4
  %s6 = sld [smem:[#allocation0]]
  $region65: #{tpu_custom_call.1} parent=0
    _
  %s8 = ssub.s32 1, %s6
  %s9 = scalar_select 0, %s8, %s6
  $region1: #{tpu_custom_call.1} parent=0
    #allocation2 [shape = 'u8[8192]{0}', space=vmem, size = 0x2000, scoped, tag = 'input window, operand 0']
    #allocation3 [shape = 's32[2]{0}', space=sflag, size = 0x8, scoped, tag = 'scoped memory for tpu_custom_call.1']
    #allocation4 [shape = 's32[2]{0}', space=sflag, size = 0x8, scoped, tag = 'scoped memory for tpu_custom_call.1']
    #allocation5 [shape = 'u8[2048]{0}', space=vmem, size = 0x800, scoped, tag = 'input window, operand 1']
    #allocation6 [shape = 's32[2]{0}', space=sflag, size = 0x8, scoped, tag = 'scoped memory for tpu_custom_call.1']
    #allocation7 [shape = 'u8[2048]{0}', space=vmem, size = 0x800, scoped, tag = 'output window, operand 0']
    #allocation8 [shape = 'u8[1024]{0}', space=vmem, size = 0x400, scoped, tag = 'output window, operand 1']
    #allocation9 [shape = 's32[2]{0}', space=sflag, size = 0x8, scoped, tag = 'scoped memory for tpu_custom_call.1']
    #allocation10 [shape = 'u8[1024]{0}', space=vmem, size = 0x400, scoped, tag = 'output window, operand 2']
    %10 = vsyncpa [#allocation3], 0
    %s11 = scalar_lea.sflag [#allocation3], 1
    %12 = vsyncpa %s11, 0
    %13 = vsyncpa [#allocation6], 0
    %s14 = scalar_lea.sflag [#allocation6], 1
    %15 = vsyncpa %s14, 0
    %16 = vsyncpa [#allocation4], 0
    %s17 = scalar_lea.sflag [#allocation4], 1
    %18 = vsyncpa %s17, 0
    %19 = vsyncpa [#allocation9], 0
    %s20 = scalar_lea.sflag [#allocation9], 1
    %21 = vsyncpa %s20, 0
    loop: start=0, step=1, limit=4
    $region2: #{tpu_custom_call.1} parent=1 // loop_pre_header
      _
    $region3: #{tpu_custom_call.1} parent=1 // loop_header
      %s23 = sphi 0, %s27
      %p24 = scmp.ge.s32.totalorder %s23, 4
      %s30 = sphi 0, %s42
      %s31 = sphi 0, %s38
      %s32 = sphi 0, %s30
      %s33 = sphi 0, %s31
      %s34 = sphi 0, %s32
      %s35 = sphi 0, %s33
      %s47 = sphi 0, %s49
      %s50 = sphi 0, %s47
      %s51 = sphi 0, %s50
      %s67 = sphi 0, %s51
      %s75 = sphi 0, %s77
      %s78 = sphi 0, %s75
      %s79 = sphi 0, %s78
      %s95 = sphi 0, %s79
      %s103 = sphi 0, %s105
      %s106 = sphi 0, %s103
      %s107 = sphi 0, %s106
      %s123 = sphi 0, %s107
      %s131 = sphi 0, %s133
      %s134 = sphi 0, %s131
      %s135 = sphi 0, %s134
      %s151 = sphi 0, %s135
      %s159 = sphi 0, %s161
      %s162 = sphi 0, %s159
      %s163 = sphi 0, %s162
      %s179 = sphi 0, %s163
    $region4: #{tpu_custom_call.1} parent=1 // loop_header_branch
      %26 = sbr.rel (%p24) target = $region8
    $region5: #{tpu_custom_call.1} parent=1 // loop_body
      %s28 = ssub.s32 %s23, 1
      %s29 = ssub.s32 %s23, 2
      %s36 = sadd.s32 1, %s31
      %p37 = scmp.ge.s32.totalorder %s36, 1
      %s38 = scalar_select %p37, 0, %s36
      %s39 = sadd.s32 1, %s30
      %s40 = scalar_select %p37, %s39, %s30
      %p41 = scmp.ge.s32.totalorder %s40, 2
      %s42 = scalar_select %p41, 0, %s40
      %s43 = ssub.s32 %s30, %s42
      %s44 = ssub.s32 %s31, %s38
      %s45 = sor.u32 %s43, %s44
      %p46 = scmp.eq.s32.totalorder %s45, 0
      %s48 = sadd.s32 %s47, 1
      %s49 = scalar_select %p46, %s47, %s48
      %p52 = pneg %p46
      %p53 = scmp.eq.s32.totalorder %s23, 1
      %p54 = por %p52, %p53
      %p55 = scmp.ne.s32.totalorder %s47, %s50
      %p56 = scmp.eq.s32.totalorder %s23, 0
      %p57 = por %p55, %p56
      %p58 = scmp.ne.s32.totalorder %s47, %s50
      %p59 = scmp.eq.s32.totalorder %s28, 1
      %p60 = por %p58, %p59
      %p61 = scmp.ne.s32.totalorder %s50, %s51
      %p62 = scmp.eq.s32.totalorder %s28, 0
      %p63 = por %p61, %p62
      %p64 = scmp.ne.s32.totalorder %s50, %s51
      %p65 = scmp.eq.s32.totalorder %s29, 1
      %p66 = por %p64, %p65
      %p68 = scmp.ne.s32.totalorder %s51, %s67
      %p69 = scmp.eq.s32.totalorder %s29, 0
      %p70 = por %p68, %p69
      %s71 = ssub.s32 %s30, %s42
      %s72 = ssub.s32 %s31, %s38
      %s73 = sor.u32 %s71, %s72
      %p74 = scmp.eq.s32.totalorder %s73, 0
      %s76 = sadd.s32 %s75, 1
      %s77 = scalar_select %p74, %s75, %s76
      %p80 = pneg %p74
      %p81 = scmp.eq.s32.totalorder %s23, 1
      %p82 = por %p80, %p81
      %p83 = scmp.ne.s32.totalorder %s75, %s78
      %p84 = scmp.eq.s32.totalorder %s23, 0
      %p85 = por %p83, %p84
      %p86 = scmp.ne.s32.totalorder %s75, %s78
      %p87 = scmp.eq.s32.totalorder %s28, 1
      %p88 = por %p86, %p87
      %p89 = scmp.ne.s32.totalorder %s78, %s79
      %p90 = scmp.eq.s32.totalorder %s28, 0
      %p91 = por %p89, %p90
      %p92 = scmp.ne.s32.totalorder %s78, %s79
      %p93 = scmp.eq.s32.totalorder %s29, 1
      %p94 = por %p92, %p93
      %p96 = scmp.ne.s32.totalorder %s79, %s95
      %p97 = scmp.eq.s32.totalorder %s29, 0
      %p98 = por %p96, %p97
      %s99 = ssub.s32 %s30, %s42
      %s100 = ssub.s32 %s31, %s38
      %s101 = sor.u32 %s99, %s100
      %p102 = scmp.eq.s32.totalorder %s101, 0
      %s104 = sadd.s32 %s103, 1
      %s105 = scalar_select %p102, %s103, %s104
      %p108 = pneg %p102
      %p109 = scmp.eq.s32.totalorder %s23, 1
      %p110 = por %p108, %p109
      %p111 = scmp.ne.s32.totalorder %s103, %s106
      %p112 = scmp.eq.s32.totalorder %s23, 0
      %p113 = por %p111, %p112
      %p114 = scmp.ne.s32.totalorder %s103, %s106
      %p115 = scmp.eq.s32.totalorder %s28, 1
      %p116 = por %p114, %p115
      %p117 = scmp.ne.s32.totalorder %s106, %s107
      %p118 = scmp.eq.s32.totalorder %s28, 0
      %p119 = por %p117, %p118
      %p120 = scmp.ne.s32.totalorder %s106, %s107
      %p121 = scmp.eq.s32.totalorder %s29, 1
      %p122 = por %p120, %p121
      %p124 = scmp.ne.s32.totalorder %s107, %s123
      %p125 = scmp.eq.s32.totalorder %s29, 0
      %p126 = por %p124, %p125
      %s127 = ssub.s32 %s30, %s42
      %s128 = ssub.s32 %s31, %s38
      %s129 = sor.u32 %s127, %s128
      %p130 = scmp.eq.s32.totalorder %s129, 0
      %s132 = sadd.s32 %s131, 1
      %s133 = scalar_select %p130, %s131, %s132
      %p136 = pneg %p130
      %p137 = scmp.eq.s32.totalorder %s23, 1
      %p138 = por %p136, %p137
      %p139 = scmp.ne.s32.totalorder %s131, %s134
      %p140 = scmp.eq.s32.totalorder %s23, 0
      %p141 = por %p139, %p140
      %p142 = scmp.ne.s32.totalorder %s131, %s134
      %p143 = scmp.eq.s32.totalorder %s28, 1
      %p144 = por %p142, %p143
      %p145 = scmp.ne.s32.totalorder %s134, %s135
      %p146 = scmp.eq.s32.totalorder %s28, 0
      %p147 = por %p145, %p146
      %p148 = scmp.ne.s32.totalorder %s134, %s135
      %p149 = scmp.eq.s32.totalorder %s29, 1
      %p150 = por %p148, %p149
      %p152 = scmp.ne.s32.totalorder %s135, %s151
      %p153 = scmp.eq.s32.totalorder %s29, 0
      %p154 = por %p152, %p153
      %s155 = ssub.s32 %s30, %s42
      %s156 = ssub.s32 %s31, %s38
      %s157 = sor.u32 %s155, %s156
      %p158 = scmp.eq.s32.totalorder %s157, 0
      %s160 = sadd.s32 %s159, 1
      %s161 = scalar_select %p158, %s159, %s160
      %p164 = pneg %p158
      %p165 = scmp.eq.s32.totalorder %s23, 1
      %p166 = por %p164, %p165
      %p167 = scmp.ne.s32.totalorder %s159, %s162
      %p168 = scmp.eq.s32.totalorder %s23, 0
      %p169 = por %p167, %p168
      %p170 = scmp.ne.s32.totalorder %s159, %s162
      %p171 = scmp.eq.s32.totalorder %s28, 1
      %p172 = por %p170, %p171
      %p173 = scmp.ne.s32.totalorder %s162, %s163
      %p174 = scmp.eq.s32.totalorder %s28, 0
      %p175 = por %p173, %p174
      %p176 = scmp.ne.s32.totalorder %s162, %s163
      %p177 = scmp.eq.s32.totalorder %s29, 1
      %p178 = por %p176, %p177
      %p180 = scmp.ne.s32.totalorder %s163, %s179
      %p181 = scmp.eq.s32.totalorder %s29, 0
      %p182 = por %p180, %p181
      %p183 = scmp.le.s32.totalorder 1, %s23
      %p184 = scmp.lt.s32.totalorder %s23, 3
      %p185 = pnand %p183, %p184
      %p186 = pneg %p185
      // Predicated region
      $region9: #{tpu_custom_call.1} parent=5 // pred_check
        _
      $region10: #{tpu_custom_call.1} parent=5 // pred_check_branch
        %188 = sbr.rel (%p185) target = $region12
      $region11: #{tpu_custom_call.1} parent=5 // pred_region
        %s189 = ssub.s32 %s23, 1
      $region12: #{tpu_custom_call.1} parent=5 // pred_fallthru
        _
      %p190 = scmp.lt.s32.totalorder %s23, 2
      // Predicated region
      $region13: #{tpu_custom_call.1} parent=5 // pred_check
        %p191 = pneg %p190
      $region14: #{tpu_custom_call.1} parent=5 // pred_check_branch
        %193 = sbr.rel (%p191) target = $region16
      $region15: #{tpu_custom_call.1} parent=5 // pred_region
        // Predicated region
        $region17: #{tpu_custom_call.1} parent=15 // pred_check
          %p194 = pneg %p57
        $region18: #{tpu_custom_call.1} parent=15 // pred_check_branch
          %196 = sbr.rel (%p194) target = $region20
        $region19: #{tpu_custom_call.1} parent=15 // pred_region
          %s197 = sand.u32 %s47, 1
          %s198 = scalar_lea.sflag [#allocation3], %s197
          %s199 = sand.u32 %s47, 1
          %s200 = smul.addr %s199, 8
          %s201 = scalar_lea.vmem [#allocation2], %s200
          %s203 = ssub.s32 128, 128
          %204 = vsyncadd %s198, %s203
          %s205 = smul.addr %s30, 4
          %s206 = sadd.s32 %s31, %s205
          %s207 = smul.addr %s206, 32
          %s208 = scalar_lea.hbm %s0, %s207
          %s209 = sshll.u32 %s201, 4
          %s210 = int_to_ptr.vmem [resolvable:$true] %s209
          %215 = dma.hbm_to_vmem [thread:$0]  %s208, 128, %s210, %s198, 32, 32, 2
        $region20: #{tpu_custom_call.1} parent=15 // pred_fallthru
          _
        // Predicated region
        $region21: #{tpu_custom_call.1} parent=15 // pred_check
          %p216 = pneg %p85
        $region22: #{tpu_custom_call.1} parent=15 // pred_check_branch
          %218 = sbr.rel (%p216) target = $region24
        $region23: #{tpu_custom_call.1} parent=15 // pred_region
          %s219 = sand.u32 %s75, 1
          %s220 = scalar_lea.sflag [#allocation6], %s219
          %s221 = sand.u32 %s75, 1
          %s222 = smul.addr %s221, 2
          %s223 = scalar_lea.vmem [#allocation5], %s222
          %s225 = ssub.s32 32, 32
          %226 = vsyncadd %s220, %s225
          %s227 = sadd.s32 %s31, %s30
          %s228 = smul.addr %s227, 32
          %s229 = scalar_lea.hbm %s1, %s228
          %s231 = sshll.u32 %s223, 4
          %s232 = int_to_ptr.vmem [resolvable:$true] %s231
          %234 = dma.hbm_to_vmem [thread:$0]  %s229, 32, %s232, %s220
        $region24: #{tpu_custom_call.1} parent=15 // pred_fallthru
          _
      $region16: #{tpu_custom_call.1} parent=5 // pred_fallthru
        _
      %p235 = scmp.le.s32.totalorder 1, %s23
      %p236 = scmp.lt.s32.totalorder %s23, 3
      %p237 = pnand %p235, %p236
      %p238 = pneg %p237
      // Predicated region
      $region25: #{tpu_custom_call.1} parent=5 // pred_check
        _
      $region26: #{tpu_custom_call.1} parent=5 // pred_check_branch
        %240 = sbr.rel (%p237) target = $region28
      $region27: #{tpu_custom_call.1} parent=5 // pred_region
        %s241 = ssub.s32 %s23, 1
        %s242 = sand.u32 %s50, 1
        %s243 = scalar_lea.sflag [#allocation3], %s242
        %s244 = sand.u32 %s50, 1
        %s245 = smul.addr %s244, 8
        %s246 = scalar_lea.vmem [#allocation2], %s245
        // Predicated region
        $region29: #{tpu_custom_call.1} parent=27 // pred_check
          %p247 = pneg %p63
        $region30: #{tpu_custom_call.1} parent=27 // pred_check_branch
          %249 = sbr.rel (%p247) target = $region32
        $region31: #{tpu_custom_call.1} parent=27 // pred_region
          %250 = dma.done %s243, 128
        $region32: #{tpu_custom_call.1} parent=27 // pred_fallthru
          _
        %s251 = sand.u32 %s78, 1
        %s252 = scalar_lea.sflag [#allocation6], %s251
        %s253 = sand.u32 %s78, 1
        %s254 = smul.addr %s253, 2
        %s255 = scalar_lea.vmem [#allocation5], %s254
        // Predicated region
        $region33: #{tpu_custom_call.1} parent=27 // pred_check
          %p256 = pneg %p91
        $region34: #{tpu_custom_call.1} parent=27 // pred_check_branch
          %258 = sbr.rel (%p256) target = $region36
        $region35: #{tpu_custom_call.1} parent=27 // pred_region
          %259 = dma.done %s252, 32
        $region36: #{tpu_custom_call.1} parent=27 // pred_fallthru
          _
        %s260 = sand.u32 %s50, 1
        %s261 = scalar_lea.sflag [#allocation3], %s260
        %s262 = sand.u32 %s50, 1
        %s263 = smul.addr %s262, 8
        %s264 = scalar_lea.vmem [#allocation2], %s263
        %p265 = pneg %p63
        %p266 = pneg %p60
        %s267 = sand.u32 %s78, 1
        %s268 = scalar_lea.sflag [#allocation6], %s267
        %s269 = sand.u32 %s78, 1
        %s270 = smul.addr %s269, 2
        %s271 = scalar_lea.vmem [#allocation5], %s270
        %p272 = pneg %p91
        %p273 = pneg %p88
        %p274 = pneg %p119
        %p275 = pneg %p116
        %s276 = sand.u32 %s106, 1
        %s277 = scalar_lea.sflag [#allocation4], %s276
        %s278 = sand.u32 %s106, 1
        %s279 = smul.addr %s278, 2
        %s280 = scalar_lea.vmem [#allocation7], %s279
        %p281 = pneg %p147
        %p282 = pneg %p144
        %s283 = sand.u32 %s28, 1
        %s284 = scalar_lea.sflag [#allocation9], %s283
        %s285 = sand.u32 %s134, 1
        %s286 = scalar_lea.vmem [#allocation8], %s285
        %p287 = pneg %p175
        %p288 = pneg %p172
        %s289 = sand.u32 %s28, 1
        %s290 = scalar_lea.sflag [#allocation9], %s289
        %s291 = sand.u32 %s162, 1
        %s292 = scalar_lea.vmem [#allocation10], %s291
        %v293 = vld [vmem:[%s255] sm:$0x3]
        %v294 = vld [vmem:[%s246] sm:$0x3]
        %s295 = sadd.s32 0, 2
        %s296 = scalar_lea.vmem %s246, %s295 [#allocation2]
        %v297 = vld [vmem:[%s296] sm:$0x3]
        %v298 = vmax.f32 %v294, %v297
        %s299 = sadd.s32 0, 4
        %s300 = scalar_lea.vmem %s246, %s299 [#allocation2]
        %v301 = vld [vmem:[%s300] sm:$0x3]
        %v302 = vmax.f32 %v298, %v301
        %s303 = sadd.s32 0, 6
        %s304 = scalar_lea.vmem %s246, %s303 [#allocation2]
        %v305 = vld [vmem:[%s304] sm:$0x3]
        %v306 = vmax.f32 %v302, %v305
        %v307 = vsub.f32 %v294, %v306
        %v308 = vmul.f32 %v307, 1.442695
        %v309 = vpow.pop %v308
        %v310 = vadd.f32 %v309, 0.0
        %vm311 = vcmp.eq.s32.totalorder %v293, 0
        %v312 = vsel %vm311, %v294, 0.0
        %v313 = vsub.f32 %v297, %v306
        %v314 = vmul.f32 %v313, 1.442695
        %v315 = vpow.pop %v314
        %v316 = vadd.f32 %v310, %v315
        %vm317 = vcmp.eq.s32.totalorder %v293, 1
        %v318 = vsel %vm317, %v297, %v312
        %v319 = vsub.f32 %v301, %v306
        %v320 = vmul.f32 %v319, 1.442695
        %v321 = vpow.pop %v320
        %v322 = vadd.f32 %v316, %v321
        %vm323 = vcmp.eq.s32.totalorder %v293, 2
        %v324 = vsel %vm323, %v301, %v318
        %v325 = vsub.f32 %v305, %v306
        %v326 = vmul.f32 %v325, 1.442695
        %v327 = vpow.pop %v326
        %v328 = vadd.f32 %v322, %v327
        %vm329 = vcmp.eq.s32.totalorder %v293, 3
        %v330 = vsel %vm329, %v305, %v324
        %v331 = vlog2.pop %v328
        %v332 = vmul.f32 %v331, 0.6931472
        %v333 = vadd.f32 %v306, %v332
        %v334 = vsub.f32 %v333, %v330
        %vm335 = vcmp.ne.s32.totalorder %v293, 255
        %v336 = vsel %vm335, %v334, 0.0
        %337 = vst [vmem:[%s280] sm:$0x3] %v336
        %vm338 = vcmp.gt.f32.partialorder %v336, 0.35667494
        %v339 = vsel %vm338, %v336, 0.0
        %vm340 = vcmask 1041408
        %v341 = vsel %vm340, %v339, 0.0
        %v342 = vrot.slane %v341, 4
        %v343 = vadd.f32 %v341, %v342
        %v344 = vrot.slane %v343, 2
        %v345 = vadd.f32 %v343, %v344
        %v346 = vrot.slane %v345, 1
        %v347 = vadd.f32 %v345, %v346
        %v348 = vsel %vm338, 1, 0
        %v349 = vcvt.s32.f32 %v348
        %v350 = vsel %vm340, %v349, 0.0
        %v351 = vrot.slane %v350, 4
        %v352 = vadd.f32 %v350, %v351
        %v353 = vrot.slane %v352, 2
        %v354 = vadd.f32 %v352, %v353
        %v355 = vrot.slane %v354, 1
        %v356 = vadd.f32 %v354, %v355
        %v357 = vadd.f32 %v347, 0.0
        %v358 = vadd.f32 %v356, 0.0
        %359 = vst [vmem:[%s286] sm:$0x1] %v357
        %360 = vst [vmem:[%s292] sm:$0x1] %v358
        %s361 = sand.u32 %s106, 1
        %s362 = scalar_lea.sflag [#allocation4], %s361
        %s363 = sand.u32 %s106, 1
        %s364 = smul.addr %s363, 2
        %s365 = scalar_lea.vmem [#allocation7], %s364
        %s366 = sand.u32 %s28, 1
        %s367 = scalar_lea.sflag [#allocation9], %s366
        %s368 = sand.u32 %s134, 1
        %s369 = scalar_lea.vmem [#allocation8], %s368
        %s370 = sand.u32 %s28, 1
        %s371 = scalar_lea.sflag [#allocation9], %s370
        %s372 = sand.u32 %s162, 1
        %s373 = scalar_lea.vmem [#allocation10], %s372
        // Predicated region
        $region37: #{tpu_custom_call.1} parent=27 // pred_check
          %p374 = pneg %p116
        $region38: #{tpu_custom_call.1} parent=27 // pred_check_branch
          %376 = sbr.rel (%p374) target = $region40
        $region39: #{tpu_custom_call.1} parent=27 // pred_region
          %s378 = ssub.s32 32, 32
          %379 = vsyncadd %s362, %s378
          %s380 = sadd.s32 %s33, %s32
          %s381 = smul.addr %s380, 32
          %s382 = scalar_lea.hbm %s2, %s381
          %s384 = sshll.u32 %s365, 4
          %s385 = int_to_ptr.vmem [resolvable:$true] %s384
          %387 = dma.vmem_to_hbm [thread:$0]  %s385, 32, %s382, %s362
        $region40: #{tpu_custom_call.1} parent=27 // pred_fallthru
          _
        // Predicated region
        $region41: #{tpu_custom_call.1} parent=27 // pred_check
          %p388 = pneg %p144
        $region42: #{tpu_custom_call.1} parent=27 // pred_check_branch
          %390 = sbr.rel (%p388) target = $region44
        $region43: #{tpu_custom_call.1} parent=27 // pred_region
          %s392 = ssub.s32 16, 16
          %393 = vsyncadd %s367, %s392
          %s394 = sadd.s32 %s33, %s32
          %s395 = smul.addr %s394, 16
          %s396 = scalar_lea.hbm %s3, %s395
          %s398 = sshll.u32 %s369, 4
          %s399 = int_to_ptr.vmem [resolvable:$true] %s398
          %401 = dma.vmem_to_hbm [thread:$0]  %s399, 16, %s396, %s367
        $region44: #{tpu_custom_call.1} parent=27 // pred_fallthru
          _
        // Predicated region
        $region45: #{tpu_custom_call.1} parent=27 // pred_check
          %p402 = pneg %p172
        $region46: #{tpu_custom_call.1} parent=27 // pred_check_branch
          %404 = sbr.rel (%p402) target = $region48
        $region47: #{tpu_custom_call.1} parent=27 // pred_region
          %s406 = ssub.s32 16, 16
          %407 = vsyncadd %s371, %s406
          %s408 = sadd.s32 %s33, %s32
          %s409 = smul.addr %s408, 16
          %s410 = scalar_lea.hbm %s4, %s409
          %s412 = sshll.u32 %s373, 4
          %s413 = int_to_ptr.vmem [resolvable:$true] %s412
          %415 = dma.vmem_to_hbm [thread:$0]  %s413, 16, %s410, %s371
        $region48: #{tpu_custom_call.1} parent=27 // pred_fallthru
          _
      $region28: #{tpu_custom_call.1} parent=5 // pred_fallthru
        _
      %p416 = scmp.le.s32.totalorder 2, %s23
      // Predicated region
      $region49: #{tpu_custom_call.1} parent=5 // pred_check
        %p417 = pneg %p416
      $region50: #{tpu_custom_call.1} parent=5 // pred_check_branch
        %419 = sbr.rel (%p417) target = $region52
      $region51: #{tpu_custom_call.1} parent=5 // pred_region
        %s420 = ssub.s32 %s23, 2
        // Predicated region
        $region53: #{tpu_custom_call.1} parent=51 // pred_check
          %p421 = pneg %p122
        $region54: #{tpu_custom_call.1} parent=51 // pred_check_branch
          %423 = sbr.rel (%p421) target = $region56
        $region55: #{tpu_custom_call.1} parent=51 // pred_region
          %s424 = sand.u32 %s107, 1
          %s425 = scalar_lea.sflag [#allocation4], %s424
          %s426 = sand.u32 %s107, 1
          %s427 = smul.addr %s426, 2
          %s428 = scalar_lea.vmem [#allocation7], %s427
          %429 = dma.done %s425, 32
        $region56: #{tpu_custom_call.1} parent=51 // pred_fallthru
          _
        // Predicated region
        $region57: #{tpu_custom_call.1} parent=51 // pred_check
          %p430 = pneg %p150
        $region58: #{tpu_custom_call.1} parent=51 // pred_check_branch
          %432 = sbr.rel (%p430) target = $region60
        $region59: #{tpu_custom_call.1} parent=51 // pred_region
          %s433 = sand.u32 %s29, 1
          %s434 = scalar_lea.sflag [#allocation9], %s433
          %s435 = sand.u32 %s135, 1
          %s436 = scalar_lea.vmem [#allocation8], %s435
          %437 = dma.done %s434, 16
        $region60: #{tpu_custom_call.1} parent=51 // pred_fallthru
          _
        // Predicated region
        $region61: #{tpu_custom_call.1} parent=51 // pred_check
          %p438 = pneg %p178
        $region62: #{tpu_custom_call.1} parent=51 // pred_check_branch
          %440 = sbr.rel (%p438) target = $region64
        $region63: #{tpu_custom_call.1} parent=51 // pred_region
          %s441 = sand.u32 %s29, 1
          %s442 = scalar_lea.sflag [#allocation9], %s441
          %s443 = sand.u32 %s163, 1
          %s444 = scalar_lea.vmem [#allocation10], %s443
          %445 = dma.done %s442, 16
        $region64: #{tpu_custom_call.1} parent=51 // pred_fallthru
          _
      $region52: #{tpu_custom_call.1} parent=5 // pred_fallthru
        _
    $region6: #{tpu_custom_call.1} parent=1 // loop_footer
      %s27 = sadd.s32 1, %s23
    $region7: #{tpu_custom_call.1} parent=1 // loop_footer_branch
      %22 = sbr.rel target = $region3
    $region8: #{tpu_custom_call.1} parent=1 // loop_exit
      _
    %446 = vsyncpa [#allocation3], 1
    %s447 = scalar_lea.sflag [#allocation3], 1
    %448 = vsyncpa %s447, 1
    %449 = vsyncpa [#allocation6], 1
    %s450 = scalar_lea.sflag [#allocation6], 1
    %451 = vsyncpa %s450, 1
    %452 = vsyncpa [#allocation4], 1
    %s453 = scalar_lea.sflag [#allocation4], 1
    %454 = vsyncpa %s453, 1
    %455 = vsyncpa [#allocation9], 1
    %s456 = scalar_lea.sflag [#allocation9], 1
    %457 = vsyncpa %s456, 1

</llo_original>
